<compile_context>
chip_gen: v5e
topology: v5e:2x2
jax: 0.10.0
libtpu: 0.0.40
codegen_flags: <defaults>
</compile_context>

<pallas_src>
import jax
import jax.numpy as jnp
from jax.experimental import pallas as pl
from jax.experimental.pallas import tpu as pltpu

LANE = 128


def _mlp_kernel(xT_ref, w1_ref, b1_ref, w2_ref, b2_ref, w3_ref, b3_ref, o_ref):
    """One batch tile of the fused 3-layer MLP, feature-major (batch on lanes)."""
    xT = xT_ref[...]  # (IN, TILE) f32

    # Layer 1 (MXU): (H, IN) @ (IN, TILE) -> (H, TILE); bias column bcast over lanes.
    h1 = jnp.dot(w1_ref[...], xT, preferred_element_type=jnp.float32) + b1_ref[...]
    h1 = jnp.maximum(h1, 0.0)

    # Layer 2 (MXU): (H2, H) @ (H, TILE) -> (H2, TILE)
    h2 = jnp.dot(w2_ref[...], h1, preferred_element_type=jnp.float32) + b2_ref[...]
    h2 = jnp.maximum(h2, 0.0)

    # Layer 3: (1, H2) @ (H2, TILE) -> (1, TILE): naturally lane-dense output row.
    # b3 is a scalar read from SMEM.
    out = jnp.dot(w3_ref[...], h2, preferred_element_type=jnp.float32) + b3_ref[0, 0]
    o_ref[...] = out.astype(o_ref.dtype)


def _cdiv(a, b):
    return -(-a // b)


def _round_up(n, m):
    return ((n + m - 1) // m) * m


def _choose_tiling(batch, tile_max=4096):
    """Pick (tile, padded_batch, n_steps): lane-aligned tiles, tile ~divides batch,
    and >=2 grid steps whenever the batch can be split (v7x dual-TensorCore)."""
    b_lane = _round_up(max(batch, 1), LANE)
    n_steps = _cdiv(b_lane, tile_max)
    if n_steps == 1 and b_lane >= 2 * LANE:
        n_steps = 2  # give v7x's second TensorCore a tile; ~free on v5e/v6e
    tile = _round_up(_cdiv(b_lane, n_steps), LANE)
    b_pad = n_steps * tile
    return tile, b_pad, n_steps


def simple_model_forward(x, params, *, tile_max=4096):
    """x: (B, input_size) float32. params: PyTorch-layout (out, in) weights, column biases."""
    w1, b1, w2, b2, w3, b3 = (
        params["w1"], params["b1"], params["w2"],
        params["b2"], params["w3"], params["b3"],
    )
    B, IN = x.shape
    H = w1.shape[0]
    H2 = w2.shape[0]

    tile, b_pad, n_steps = _choose_tiling(B, tile_max)

    # Feature-major input: batch on the lane axis. (One wrapper transpose; prefer
    # producing x as (IN, B) upstream to skip this extra HBM pass.)
    xT = x.T
    if b_pad != B:
        xT = jnp.pad(xT, ((0, 0), (0, b_pad - B)))

    # Weights / biases: same block index every grid step -> resident in VMEM,
    # DMA'd from HBM exactly once (~12 KB total).
    resident = lambda i: (0, 0)

    flops = 2 * b_pad * (IN * H + H * H2 + H2)
    bytes_accessed = 4 * (b_pad * IN + b_pad            # streamed xT + out row
                          + H * IN + H + H2 * H + H2    # resident weights/biases
                          + H2 + 1)

    out_row = pl.pallas_call(
        _mlp_kernel,
        out_shape=jax.ShapeDtypeStruct((1, b_pad), jnp.float32),
        grid=(n_steps,),
        in_specs=[
            pl.BlockSpec((IN, tile), lambda i: (0, i)),   # xT: streamed per batch tile
            pl.BlockSpec((H, IN), resident),              # W1 (out, in) = (64, 10)
            pl.BlockSpec((H, 1), resident),               # b1 column (64, 1)
            pl.BlockSpec((H2, H), resident),              # W2 (32, 64)
            pl.BlockSpec((H2, 1), resident),              # b2 column (32, 1)
            pl.BlockSpec((1, H2), resident),              # W3 row (1, 32)
            pl.BlockSpec(memory_space=pltpu.MemorySpace.SMEM),  # b3 (1,1) scalar
        ],
        out_specs=pl.BlockSpec((1, tile), lambda i: (0, i)),  # lane-dense output slab
        compiler_params=pltpu.CompilerParams(
            # independent batch tiles -> sharded across TensorCores on v7x,
            # harmless on single-TC v5e/v6e.
            dimension_semantics=("parallel",),
        ),
        cost_estimate=pl.CostEstimate(
            flops=flops, transcendentals=0, bytes_accessed=bytes_accessed),
    )(xT, w1, b1, w2, b2, w3, b3)

    return out_row[0, :B].reshape(B, 1)


def init_params(key, input_size=10, hidden_size=64):
    """Deterministic init mirroring PyTorch Linear fan-in uniform init.

    Weights stay in PyTorch (out, in) layout (feature-major kernel computes W @ x);
    biases are stored as columns (out, 1); b3 is a (1, 1) scalar.
    """
    h2 = hidden_size // 2
    k = jax.random.split(key, 6)

    def uniform(rng, shape, fan_in):
        bound = 1.0 / jnp.sqrt(float(fan_in))
        return jax.random.uniform(rng, shape, jnp.float32, -bound, bound)

    return {
        "w1": uniform(k[0], (hidden_size, input_size), input_size),
        "b1": uniform(k[1], (hidden_size, 1), input_size),
        "w2": uniform(k[2], (h2, hidden_size), hidden_size),
        "b2": uniform(k[3], (h2, 1), hidden_size),
        "w3": uniform(k[4], (1, h2), h2),
        "b3": uniform(k[5], (1, 1), h2),
    }


def _reference_forward(x, p):
    h1 = jnp.maximum(x @ p["w1"].T + p["b1"].T, 0.0)
    h2 = jnp.maximum(h1 @ p["w2"].T + p["b2"].T, 0.0)
    return h2 @ p["w3"].T + p["b3"]


if __name__ == "__main__":
    key = jax.random.PRNGKey(0)
    kx, kp, kx2 = jax.random.split(key, 3)

    input_size, hidden_size = 10, 64
    params = init_params(kp, input_size=input_size, hidden_size=hidden_size)

    # Small batch (single grid step, lane-padded to 128).
    batch = 8
    x = jax.random.normal(kx, (batch, input_size), dtype=jnp.float32)
    out = jax.block_until_ready(simple_model_forward(x, params))
    ref = _reference_forward(x, params)
    assert out.shape == (batch, 1), out.shape
    assert jnp.allclose(out, ref, atol=1e-4, rtol=1e-4), "mismatch vs reference (small batch)"

    # Larger batch: exercises the multi-tile grid (>=2 steps) + padding path.
    batch2 = 300
    x2 = jax.random.normal(kx2, (batch2, input_size), dtype=jnp.float32)
    out2 = jax.block_until_ready(simple_model_forward(x2, params))
    ref2 = _reference_forward(x2, params)
    assert out2.shape == (batch2, 1), out2.shape
    assert jnp.allclose(out2, ref2, atol=1e-4, rtol=1e-4), "mismatch vs reference (tiled batch)"

    print("KERNEL_OK")
</pallas_src>

<mosaic_0001>
module attributes {stable_mosaic.version = 11 : i64} {
  func.func @_mlp_kernel(%arg0: i32, %arg1: memref<10x128xf32, #tpu.memory_space<vmem>>, %arg2: memref<64x10xf32, #tpu.memory_space<vmem>>, %arg3: memref<64x1xf32, #tpu.memory_space<vmem>>, %arg4: memref<32x64xf32, #tpu.memory_space<vmem>>, %arg5: memref<32x1xf32, #tpu.memory_space<vmem>>, %arg6: memref<1x32xf32, #tpu.memory_space<vmem>>, %arg7: memref<1x1xf32, #tpu.memory_space<smem>>, %arg8: memref<1x128xf32, #tpu.memory_space<vmem>>) attributes {dimension_semantics = [#tpu.dimension_semantics<parallel>], iteration_bounds = array<i64: 1>, scalar_prefetch = 0 : i64, scratch_operands = 0 : i64, tpu.core_type = #tpu.core_type<tc>, window_params = [{transform_indices = @transform_0, window_bounds = array<i64: 10, 128>}, {pipeline_mode = #tpu.pipeline_mode<synchronous>, transform_indices = @transform_1, window_bounds = array<i64: 64, 10>}, {pipeline_mode = #tpu.pipeline_mode<synchronous>, transform_indices = @transform_2, window_bounds = array<i64: 64, 1>}, {pipeline_mode = #tpu.pipeline_mode<synchronous>, transform_indices = @transform_3, window_bounds = array<i64: 32, 64>}, {pipeline_mode = #tpu.pipeline_mode<synchronous>, transform_indices = @transform_4, window_bounds = array<i64: 32, 1>}, {pipeline_mode = #tpu.pipeline_mode<synchronous>, transform_indices = @transform_5, window_bounds = array<i64: 1, 32>}, {transform_indices = @transform_6, window_bounds = array<i64: 1, 1>}, {transform_indices = @transform_7, window_bounds = array<i64: 1, 128>}]} {
    %c0 = arith.constant 0 : index
    %c0_0 = arith.constant 0 : index
    %0 = vector.load %arg1[%c0, %c0_0] : memref<10x128xf32, #tpu.memory_space<vmem>>, vector<10x128xf32>
    %c0_1 = arith.constant 0 : index
    %c0_2 = arith.constant 0 : index
    %1 = vector.load %arg2[%c0_1, %c0_2] : memref<64x10xf32, #tpu.memory_space<vmem>>, vector<64x10xf32>
    %cst = arith.constant dense<0.000000e+00> : vector<64x128xf32>
    %2 = tpu.matmul %1, %0, %cst {dimension_numbers = #tpu.dot_dimension_numbers<[1], [0], [0], [1], [0, 0, 1, 1], [], []>} : vector<64x10xf32>, vector<10x128xf32>, vector<64x128xf32> -> vector<64x128xf32>
    %c0_3 = arith.constant 0 : index
    %c0_4 = arith.constant 0 : index
    %3 = vector.load %arg3[%c0_3, %c0_4] : memref<64x1xf32, #tpu.memory_space<vmem>>, vector<64x1xf32>
    %4 = vector.broadcast %3 : vector<64x1xf32> to vector<64x128xf32>
    %5 = arith.addf %2, %4 : vector<64x128xf32>
    %cst_5 = arith.constant 0.000000e+00 : f32
    %6 = vector.broadcast %cst_5 : f32 to vector<64x128xf32>
    %7 = arith.maximumf %5, %6 : vector<64x128xf32>
    %c0_6 = arith.constant 0 : index
    %c0_7 = arith.constant 0 : index
    %8 = vector.load %arg4[%c0_6, %c0_7] : memref<32x64xf32, #tpu.memory_space<vmem>>, vector<32x64xf32>
    %cst_8 = arith.constant dense<0.000000e+00> : vector<32x128xf32>
    %9 = tpu.matmul %8, %7, %cst_8 {dimension_numbers = #tpu.dot_dimension_numbers<[1], [0], [0], [1], [0, 0, 1, 1], [], []>} : vector<32x64xf32>, vector<64x128xf32>, vector<32x128xf32> -> vector<32x128xf32>
    %c0_9 = arith.constant 0 : index
    %c0_10 = arith.constant 0 : index
    %10 = vector.load %arg5[%c0_9, %c0_10] : memref<32x1xf32, #tpu.memory_space<vmem>>, vector<32x1xf32>
    %11 = vector.broadcast %10 : vector<32x1xf32> to vector<32x128xf32>
    %12 = arith.addf %9, %11 : vector<32x128xf32>
    %cst_11 = arith.constant 0.000000e+00 : f32
    %13 = vector.broadcast %cst_11 : f32 to vector<32x128xf32>
    %14 = arith.maximumf %12, %13 : vector<32x128xf32>
    %c0_12 = arith.constant 0 : index
    %c0_13 = arith.constant 0 : index
    %15 = vector.load %arg6[%c0_12, %c0_13] : memref<1x32xf32, #tpu.memory_space<vmem>>, vector<1x32xf32>
    %cst_14 = arith.constant dense<0.000000e+00> : vector<1x128xf32>
    %16 = tpu.matmul %15, %14, %cst_14 {dimension_numbers = #tpu.dot_dimension_numbers<[1], [0], [0], [1], [0, 0, 1, 1], [], []>} : vector<1x32xf32>, vector<32x128xf32>, vector<1x128xf32> -> vector<1x128xf32>
    %c0_15 = arith.constant 0 : index
    %c0_16 = arith.constant 0 : index
    %17 = memref.load %arg7[%c0_15, %c0_16] : memref<1x1xf32, #tpu.memory_space<smem>>
    %18 = vector.broadcast %17 : f32 to vector<1x128xf32>
    %19 = arith.addf %16, %18 : vector<1x128xf32>
    %c0_17 = arith.constant 0 : index
    %c0_18 = arith.constant 0 : index
    %20 = vector.load %arg8[%c0_17, %c0_18] : memref<1x128xf32, #tpu.memory_space<vmem>>, vector<1x128xf32>
    tpu.vector_store %arg8[%c0_17, %c0_18], %19 {strides = array<i32>} : memref<1x128xf32, #tpu.memory_space<vmem>>, vector<1x128xf32>,
    return
  }
  func.func @transform_0(%arg0: i32) -> (i32, i32) {
    %c0_i32 = arith.constant 0 : i32
    %c0_i32_0 = arith.constant 0 : i32
    return %c0_i32, %arg0 : i32, i32
  }
  func.func @transform_1(%arg0: i32) -> (i32, i32) {
    %c0_i32 = arith.constant 0 : i32
    %c0_i32_0 = arith.constant 0 : i32
    %c0_i32_1 = arith.constant 0 : i32
    return %c0_i32, %c0_i32_0 : i32, i32
  }
  func.func @transform_2(%arg0: i32) -> (i32, i32) {
    %c0_i32 = arith.constant 0 : i32
    %c0_i32_0 = arith.constant 0 : i32
    %c0_i32_1 = arith.constant 0 : i32
    return %c0_i32, %c0_i32_0 : i32, i32
  }
  func.func @transform_3(%arg0: i32) -> (i32, i32) {
    %c0_i32 = arith.constant 0 : i32
    %c0_i32_0 = arith.constant 0 : i32
    %c0_i32_1 = arith.constant 0 : i32
    return %c0_i32, %c0_i32_0 : i32, i32
  }
  func.func @transform_4(%arg0: i32) -> (i32, i32) {
    %c0_i32 = arith.constant 0 : i32
    %c0_i32_0 = arith.constant 0 : i32
    %c0_i32_1 = arith.constant 0 : i32
    return %c0_i32, %c0_i32_0 : i32, i32
  }
  func.func @transform_5(%arg0: i32) -> (i32, i32) {
    %c0_i32 = arith.constant 0 : i32
    %c0_i32_0 = arith.constant 0 : i32
    %c0_i32_1 = arith.constant 0 : i32
    return %c0_i32, %c0_i32_0 : i32, i32
  }
  func.func @transform_6(%arg0: i32) -> (i32, i32) {
    %c0_i32 = arith.constant 0 : i32
    %c0_i32_0 = arith.constant 0 : i32
    %c0_i32_1 = arith.constant 0 : i32
    return %c0_i32, %c0_i32_0 : i32, i32
  }
  func.func @transform_7(%arg0: i32) -> (i32, i32) {
    %c0_i32 = arith.constant 0 : i32
    %c0_i32_0 = arith.constant 0 : i32
    return %c0_i32, %arg0 : i32, i32
  }
}

</mosaic_0001>

<llo_original>
// kernel: tpu_custom_call.1
$region0: #{tpu_custom_call.1}
  #allocation0 [shape = 'u32[]', space=smem, size = 0x4, offset = 0x4, fixed_abs, tag = 'smem constant byte address 0x4 - core index']
  #allocation1 [shape = 'u32[72,128]{1,0:T(1,128)}', space=vmem, size = 0x9000, scoped, tag = 'internal scratch']
  #allocation2 [shape = 'f32[1,1]{1,0:T(1,128)S(6)}', space=smem, size = 0x200, scoped, tag = 'scoped memory for tpu_custom_call.1']
  %s0 = inlined_call_operand.vmem [shape: f32[10,128], index: 0, kind: input, shape index: {}]
  %s1 = inlined_call_operand.vmem [shape: f32[64,10], index: 1, kind: input, shape index: {}]
  %s2 = inlined_call_operand.vmem [shape: f32[64,1], index: 2, kind: input, shape index: {}]
  %s3 = inlined_call_operand.vmem [shape: f32[32,64], index: 3, kind: input, shape index: {}]
  %s4 = inlined_call_operand.vmem [shape: f32[32,1], index: 4, kind: input, shape index: {}]
  %s5 = inlined_call_operand.vmem [shape: f32[1,32], index: 5, kind: input, shape index: {}]
  %s6 = inlined_call_operand.<no memory space> [shape: f32[1,1], index: 6, kind: input, shape index: {}]
  %s7 = inlined_call_operand.hbm [shape: f32[1,128], index: 7, kind: output, shape index: {}]
  %s8 = sld [smem:[#allocation0]]
  $region38: #{tpu_custom_call.1} parent=0
    _
  %s10 = ssub.s32 1, %s8
  %s11 = scalar_select 0, %s10, %s8
  %12 = sst [smem:[#allocation2]] %s6
  $region1: #{tpu_custom_call.1} parent=0
    #allocation3 [shape = 'u8[512]{0}', space=vmem, size = 0x400, scoped, tag = 'output window, operand 0, single buffered']
    #allocation4 [shape = 's32[1]{0}', space=sflag, size = 0x4, scoped, tag = 'scoped memory for tpu_custom_call.1']
    %13 = vsyncpa [#allocation4], 0
    // Predicated region
    $region2: #{tpu_custom_call.1} parent=1 // pred_check
      _
    $region3: #{tpu_custom_call.1} parent=1 // pred_check_branch
      %15 = sbr.rel (0) target = $region5
    $region4: #{tpu_custom_call.1} parent=1 // pred_region
      _
    $region5: #{tpu_custom_call.1} parent=1 // pred_fallthru
      _
    // Predicated region
    $region6: #{tpu_custom_call.1} parent=1 // pred_check
      _
    $region7: #{tpu_custom_call.1} parent=1 // pred_check_branch
      %17 = sbr.rel (0) target = $region9
    $region8: #{tpu_custom_call.1} parent=1 // pred_region
      _
    $region9: #{tpu_custom_call.1} parent=1 // pred_fallthru
      _
    // Predicated region
    $region10: #{tpu_custom_call.1} parent=1 // pred_check
      _
    $region11: #{tpu_custom_call.1} parent=1 // pred_check_branch
      %19 = sbr.rel (0) target = $region13
    $region12: #{tpu_custom_call.1} parent=1 // pred_region
      _
    $region13: #{tpu_custom_call.1} parent=1 // pred_fallthru
      _
    // Predicated region
    $region14: #{tpu_custom_call.1} parent=1 // pred_check
      _
    $region15: #{tpu_custom_call.1} parent=1 // pred_check_branch
      %21 = sbr.rel (0) target = $region17
    $region16: #{tpu_custom_call.1} parent=1 // pred_region
      _
    $region17: #{tpu_custom_call.1} parent=1 // pred_fallthru
      _
    // Predicated region
    $region18: #{tpu_custom_call.1} parent=1 // pred_check
      _
    $region19: #{tpu_custom_call.1} parent=1 // pred_check_branch
      %23 = sbr.rel (0) target = $region21
    $region20: #{tpu_custom_call.1} parent=1 // pred_region
      _
    $region21: #{tpu_custom_call.1} parent=1 // pred_fallthru
      _
    // Predicated region
    $region22: #{tpu_custom_call.1} parent=1 // pred_check
      _
    $region23: #{tpu_custom_call.1} parent=1 // pred_check_branch
      %25 = sbr.rel (0) target = $region25
    $region24: #{tpu_custom_call.1} parent=1 // pred_region
      _
    $region25: #{tpu_custom_call.1} parent=1 // pred_fallthru
      _
    // Predicated region
    $region26: #{tpu_custom_call.1} parent=1 // pred_check
      _
    $region27: #{tpu_custom_call.1} parent=1 // pred_check_branch
      %27 = sbr.rel (0) target = $region29
    $region28: #{tpu_custom_call.1} parent=1 // pred_region
      _
    $region29: #{tpu_custom_call.1} parent=1 // pred_fallthru
      _
    %v28 = vld [vmem:[%s0] sm:$0xff]
    %v29 = vld [vmem:[%s0 + $0x8] sm:$0x3]
    %v30 = vld [vmem:[%s1] sm:$0xff]
    %v31 = vld [vmem:[%s1 + $0x8] sm:$0xff]
    %v32 = vld [vmem:[%s1 + $0x10] sm:$0xff]
    %v33 = vld [vmem:[%s1 + $0x18] sm:$0xff]
    %v34 = vld [vmem:[%s1 + $0x20] sm:$0xff]
    %v35 = vld [vmem:[%s1 + $0x28] sm:$0xff]
    %v36 = vld [vmem:[%s1 + $0x30] sm:$0xff]
    %v37 = vld [vmem:[%s1 + $0x38] sm:$0xff]
    %v38 = vld [vmem:[%s2] sm:$0xff]
    %v39 = vld [vmem:[%s2 + $0x8] sm:$0xff]
    %v40 = vld [vmem:[%s2 + $0x10] sm:$0xff]
    %v41 = vld [vmem:[%s2 + $0x18] sm:$0xff]
    %v42 = vld [vmem:[%s2 + $0x20] sm:$0xff]
    %v43 = vld [vmem:[%s2 + $0x28] sm:$0xff]
    %v44 = vld [vmem:[%s2 + $0x30] sm:$0xff]
    %v45 = vld [vmem:[%s2 + $0x38] sm:$0xff]
    %47 = vset.pattern.permute.xlu0 0
    %48 = vperm.xlu0 %47, %v38
    %v49 = vpop.permute.xlu0 %48
    %52 = vset.pattern.permute.xlu0 0
    %53 = vperm.xlu0 %52, %v39
    %v54 = vpop.permute.xlu0 %53
    %57 = vset.pattern.permute.xlu0 0
    %58 = vperm.xlu0 %57, %v40
    %v59 = vpop.permute.xlu0 %58
    %62 = vset.pattern.permute.xlu0 0
    %63 = vperm.xlu0 %62, %v41
    %v64 = vpop.permute.xlu0 %63
    %67 = vset.pattern.permute.xlu0 0
    %68 = vperm.xlu0 %67, %v42
    %v69 = vpop.permute.xlu0 %68
    %72 = vset.pattern.permute.xlu0 0
    %73 = vperm.xlu0 %72, %v43
    %v74 = vpop.permute.xlu0 %73
    %77 = vset.pattern.permute.xlu0 0
    %78 = vperm.xlu0 %77, %v44
    %v79 = vpop.permute.xlu0 %78
    %82 = vset.pattern.permute.xlu0 0
    %83 = vperm.xlu0 %82, %v45
    %v84 = vpop.permute.xlu0 %83
    %vm86 = vcmask 80896
    %v88 = vsel %vm86, %v30, 0
    %v91 = vsel %vm86, %v31, 0
    %v94 = vsel %vm86, %v32, 0
    %v97 = vsel %vm86, %v33, 0
    %v100 = vsel %vm86, %v34, 0
    %v103 = vsel %vm86, %v35, 0
    %v106 = vsel %vm86, %v36, 0
    %v109 = vsel %vm86, %v37, 0
    %vm111 = vcmask 1041408
    %v113 = vsel %vm111, %v29, 0
    %115 = vmatpush.msra.mxu0 0.0
    %116 = vmatpush.msra.mxu0 0.0
    %117 = vmatpush.msra.mxu0 0.0
    %118 = vmatpush.msra.mxu0 0.0
    %119 = vmatpush.msra.mxu0 0.0
    %120 = vmatpush.msra.mxu0 0.0
    %121 = vmatpush.msra.mxu0 0.0
    %122 = vmatpush.msra.mxu0 0.0
    %123 = vmatpush.msra.mxu0 0.0
    %124 = vmatpush.msra.mxu0 0.0
    %125 = vmatpush.msra.mxu0 0.0
    %126 = vmatpush.msra.mxu0 0.0
    %127 = vmatpush.msra.mxu0 0.0
    %128 = vmatpush.msra.mxu0 0.0
    %129 = vmatpush.msra.mxu0 %v113
    %130 = vmatpush.msra.mxu0 %v28
    %131 = vmatmul.f32.gmra.mxu0 %v88
    %v132 = vpop.f32.mrf.mxu0
    %v133 = vadd.f32 %v49, %v132
    %134 = vmatmul.f32.gmra.mxu0 %v91
    %v135 = vpop.f32.mrf.mxu0
    %v136 = vadd.f32 %v54, %v135
    %137 = vmatmul.f32.gmra.mxu0 %v94
    %v138 = vpop.f32.mrf.mxu0
    %v139 = vadd.f32 %v59, %v138
    %140 = vmatmul.f32.gmra.mxu0 %v97
    %v141 = vpop.f32.mrf.mxu0
    %v142 = vadd.f32 %v64, %v141
    %143 = vmatmul.f32.gmra.mxu0 %v100
    %v144 = vpop.f32.mrf.mxu0
    %v145 = vadd.f32 %v69, %v144
    %146 = vmatmul.f32.gmra.mxu0 %v103
    %v147 = vpop.f32.mrf.mxu0
    %v148 = vadd.f32 %v74, %v147
    %149 = vmatmul.f32.gmra.mxu0 %v106
    %v150 = vpop.f32.mrf.mxu0
    %v151 = vadd.f32 %v79, %v150
    %152 = vmatmul.f32.gmra.mxu0 %v109
    %v153 = vpop.f32.mrf.mxu0
    %v154 = vadd.f32 %v84, %v153
    %155 = vdwg.mxu0
    %v156 = vmax.f32 %v133, 0.0
    %v157 = vmax.f32 %v136, 0.0
    %v158 = vmax.f32 %v139, 0.0
    %v159 = vmax.f32 %v142, 0.0
    %v160 = vmax.f32 %v145, 0.0
    %v161 = vmax.f32 %v148, 0.0
    %v162 = vmax.f32 %v151, 0.0
    %v163 = vmax.f32 %v154, 0.0
    %v164 = vld [vmem:[%s3] sm:$0xff]
    %v165 = vld [vmem:[%s3 + $0x8] sm:$0xff]
    %v166 = vld [vmem:[%s3 + $0x10] sm:$0xff]
    %v167 = vld [vmem:[%s3 + $0x18] sm:$0xff]
    %v168 = vld [vmem:[%s4] sm:$0xff]
    %v169 = vld [vmem:[%s4 + $0x8] sm:$0xff]
    %v170 = vld [vmem:[%s4 + $0x10] sm:$0xff]
    %v171 = vld [vmem:[%s4 + $0x18] sm:$0xff]
    %173 = vset.pattern.permute.xlu0 0
    %174 = vperm.xlu0 %173, %v168
    %v175 = vpop.permute.xlu0 %174
    %178 = vset.pattern.permute.xlu0 0
    %179 = vperm.xlu0 %178, %v169
    %v180 = vpop.permute.xlu0 %179
    %183 = vset.pattern.permute.xlu0 0
    %184 = vperm.xlu0 %183, %v170
    %v185 = vpop.permute.xlu0 %184
    %188 = vset.pattern.permute.xlu0 0
    %189 = vperm.xlu0 %188, %v171
    %v190 = vpop.permute.xlu0 %189
    %vm192 = vcmask 523264
    %v194 = vsel %vm192, %v164, 0
    %v197 = vsel %vm192, %v165, 0
    %v200 = vsel %vm192, %v166, 0
    %v203 = vsel %vm192, %v167, 0
    %205 = vmatpush.msra.mxu0 0.0
    %206 = vmatpush.msra.mxu0 0.0
    %207 = vmatpush.msra.mxu0 0.0
    %208 = vmatpush.msra.mxu0 0.0
    %209 = vmatpush.msra.mxu0 0.0
    %210 = vmatpush.msra.mxu0 0.0
    %211 = vmatpush.msra.mxu0 0.0
    %212 = vmatpush.msra.mxu0 0.0
    %213 = vmatpush.msra.mxu0 %v163
    %214 = vmatpush.msra.mxu0 %v162
    %215 = vmatpush.msra.mxu0 %v161
    %216 = vmatpush.msra.mxu0 %v160
    %217 = vmatpush.msra.mxu0 %v159
    %218 = vmatpush.msra.mxu0 %v158
    %219 = vmatpush.msra.mxu0 %v157
    %220 = vmatpush.msra.mxu0 %v156
    %221 = vmatmul.f32.gmra.mxu0 %v194
    %v222 = vpop.f32.mrf.mxu0
    %v223 = vadd.f32 %v175, %v222
    %224 = vmatmul.f32.gmra.mxu0 %v197
    %v225 = vpop.f32.mrf.mxu0
    %v226 = vadd.f32 %v180, %v225
    %227 = vmatmul.f32.gmra.mxu0 %v200
    %v228 = vpop.f32.mrf.mxu0
    %v229 = vadd.f32 %v185, %v228
    %230 = vmatmul.f32.gmra.mxu0 %v203
    %v231 = vpop.f32.mrf.mxu0
    %v232 = vadd.f32 %v190, %v231
    %233 = vdwg.mxu0
    %v234 = vmax.f32 %v223, 0.0
    %v235 = vmax.f32 %v226, 0.0
    %v236 = vmax.f32 %v229, 0.0
    %v237 = vmax.f32 %v232, 0.0
    %v238 = vld [vmem:[%s5] sm:$0x1]
    %s239 = sld [smem:[#allocation2]]
    %v240 = vstv %s239
    %vm241 = vcmask 261120
    %v243 = vsel %vm241, %v238, 0
    %245 = vmatpush.msra.mxu0 0.0
    %246 = vmatpush.msra.mxu0 0.0
    %247 = vmatpush.msra.mxu0 0.0
    %248 = vmatpush.msra.mxu0 0.0
    %249 = vmatpush.msra.mxu0 0.0
    %250 = vmatpush.msra.mxu0 0.0
    %251 = vmatpush.msra.mxu0 0.0
    %252 = vmatpush.msra.mxu0 0.0
    %253 = vmatpush.msra.mxu0 0.0
    %254 = vmatpush.msra.mxu0 0.0
    %255 = vmatpush.msra.mxu0 0.0
    %256 = vmatpush.msra.mxu0 0.0
    %257 = vmatpush.msra.mxu0 %v237
    %258 = vmatpush.msra.mxu0 %v236
    %259 = vmatpush.msra.mxu0 %v235
    %260 = vmatpush.msra.mxu0 %v234
    %261 = vmatmul.f32.gmra.mxu0 %v243
    %v262 = vpop.f32.mrf.mxu0
    %v263 = vadd.f32 %v240, %v262
    %264 = vdwg.mxu0
    %265 = vst [vmem:[#allocation3] sm:$0x1] %v263
    // Predicated region
    $region30: #{tpu_custom_call.1} parent=1 // pred_check
      _
    $region31: #{tpu_custom_call.1} parent=1 // pred_check_branch
      %267 = sbr.rel (0) target = $region33
    $region32: #{tpu_custom_call.1} parent=1 // pred_region
      %269 = vsyncadd [#allocation4], 0
      %s271 = sshll.u32 [#allocation3], 4
      %s272 = int_to_ptr.vmem [resolvable:$true] %s271
      %s273 = sshll.u32 %s7, 4
      %s274 = int_to_ptr.hbm [resolvable:$true] %s273
      %276 = dma.vmem_to_hbm [thread:$0]  %s272, 16, %s274, [#allocation4]
    $region33: #{tpu_custom_call.1} parent=1 // pred_fallthru
      _
    // Predicated region
    $region34: #{tpu_custom_call.1} parent=1 // pred_check
      _
    $region35: #{tpu_custom_call.1} parent=1 // pred_check_branch
      %278 = sbr.rel (0) target = $region37
    $region36: #{tpu_custom_call.1} parent=1 // pred_region
      %280 = dma.done [#allocation4], 16
    $region37: #{tpu_custom_call.1} parent=1 // pred_fallthru
      _
    %281 = vsyncpa [#allocation4], 1

</llo_original>
